<compile_context>
chip_gen: v7x
topology: tpu7x:2x2x1
jax: 0.10.0
libtpu: 0.0.40
codegen_flags: <defaults>
</compile_context>

<pallas_src>
import math
from functools import partial

import jax
import jax.numpy as jnp
from jax.experimental import pallas as pl
from jax.experimental.pallas import tpu as pltpu


# ---------------------------------------------------------------------------
# Architecture spec (cin, cout, kernel, stride) — static Python data
# ---------------------------------------------------------------------------
ENC_ARCH = {
    "conv1": [(3, 64, 3, 1), (64, 64, 4, 2)],
    "conv2": [(64, 128, 3, 1), (128, 128, 4, 2)],
    "conv3": [(128, 256, 3, 1), (256, 256, 3, 1), (256, 256, 3, 1), (256, 256, 4, 2)],
    "conv4": [(256, 512, 3, 1), (512, 512, 4, 2)],
}
DEC_ARCH = {
    "rconv1": [(512, 512, 3, 1), (512, 256, 4, 2)],
    "rconv2": [(256, 256, 3, 1), (256, 256, 3, 1), (256, 256, 3, 1), (256, 128, 4, 2)],
    "rconv3": [(128, 128, 3, 1), (128, 64, 4, 2)],
    "rconv4": [(64, 64, 3, 1), (64, 3, 4, 2)],
}


def _rup(x, m):
    return (x + m - 1) // m * m


def _largest_tile(dp, cap, mult):
    """Largest multiple of `mult` that is <= cap and divides dp (dp % mult == 0)."""
    assert dp % mult == 0 and dp >= mult
    t = min(max(cap, mult), dp)
    t -= t % mult
    while dp % t != 0:
        t -= mult
    return t


def _num_tensorcores():
    """Best-effort TensorCore-per-chip count (2 on v7x / megacore parts)."""
    try:
        kind = jax.devices()[0].device_kind.lower().replace(" ", "")
        if "v7" in kind or "7x" in kind:
            return 2
        if "v4" in kind or "v5p" in kind:       # megacore
            return 2
    except Exception:
        pass
    return 1


_NUM_TC = _num_tensorcores()

# Per-layer VMEM footprint budget for tile selection (double-buffered tiles + acc).
_TILE_BUDGET = 26 * 1024 * 1024
_MAX_W_TILE_ELEMS = 2 * 1024 * 1024     # weight tile <= 4 MB bf16 (FC weight streaming)


def _select_tiles(Mp, Kp, Np):
    """Per-layer (tm, tk, tn). All returned tiles divide the padded dims."""
    if Mp <= 16:
        # Batch-1 FC bottleneck: pure weight streaming.  Large weight tiles cut the
        # per-grid-step fixed cost; split N across cores on multi-TC chips.
        tm = Mp
        tn = _largest_tile(Np, min(2048, max(128, Np // _NUM_TC)), 128)
        tk_cap = max(128, (_MAX_W_TILE_ELEMS // tn) // 128 * 128)
        tk = _largest_tile(Kp, tk_cap, 128)
        return tm, tk, tn

    # Conv layers: full-K tiles (fewer accumulator passes, MXU fed with deep K),
    # tall M tiles for narrow-N layers, bounded by the VMEM budget.
    tk = _largest_tile(Kp, 2304, 128)
    tn = _largest_tile(Np, 512, 128)
    row_bytes = 2 * tk * 2 + tn * 4 + 2 * tn * 2        # x(db) + f32 acc + out(db)
    w_db_bytes = 2 * tk * tn * 2                        # weight (db)
    tm_cap = max(16, (_TILE_BUDGET - w_db_bytes) // row_bytes)
    tm_cap = min(tm_cap, 2048 if Np <= 256 else 512)
    tm_cap = max(16, (tm_cap // 16) * 16)
    tm = _largest_tile(Mp, min(tm_cap, Mp), 16)

    if _NUM_TC > 1:
        # Guarantee >= _NUM_TC "parallel" output blocks so no TensorCore idles.
        while (Mp // tm) * (Np // tn) < _NUM_TC:
            if tm >= 32:
                new_tm = _largest_tile(Mp, tm // 2, 16)
                if new_tm < tm:
                    tm = new_tm
                    continue
            if tn >= 256:
                new_tn = _largest_tile(Np, tn // 2, 128)
                if new_tn < tn:
                    tn = new_tn
                    continue
            break
    return tm, tk, tn


def _vmem_limit_bytes(tm, tk, tn):
    fp = (2 * tm * tk * 2      # x tile, double-buffered, bf16
          + 2 * tk * tn * 2    # w tile, double-buffered, bf16
          + 2 * tm * tn * 2    # out tile, double-buffered, bf16
          + tm * tn * 4)       # f32 accumulator scratch
    fp += 4 * 1024 * 1024      # epilogue temps + compiler scratch margin
    # Floor at the 32 MiB scoped default; cap at 48 MiB so it is safe on v7x (64 MiB).
    return int(min(max(fp, 32 * 1024 * 1024), 48 * 1024 * 1024))


# ---------------------------------------------------------------------------
# Fused matmul + per-output-channel scale/shift + activation Pallas kernel
# ---------------------------------------------------------------------------
def _mm_bn_act_kernel(x_ref, w_ref, s_ref, b_ref, o_ref, acc_ref, *, act):
    @pl.when(pl.program_id(2) == 0)
    def _():
        acc_ref[...] = jnp.zeros_like(acc_ref)

    acc_ref[...] += jnp.dot(x_ref[...], w_ref[...],
                            preferred_element_type=jnp.float32)

    @pl.when(pl.program_id(2) == pl.num_programs(2) - 1)
    def _():
        y = acc_ref[...] * s_ref[...] + b_ref[...]   # f32 epilogue (BN/bias folded)
        if act == "relu":
            y = jnp.maximum(y, 0.0)
        elif act == "tanh":
            y = jnp.tanh(y)
        o_ref[...] = y.astype(o_ref.dtype)


def fused_matmul(x, prep, act, n_out):
    """y = act((x @ w) * scale + shift)[:, :n_out], bf16 in / f32 acc / bf16 out.

    prep["w"] is a pre-padded (Kp, Np) bf16 matrix, prep["s"]/["b"] are (1, Np) f32.
    """
    wp, sp, bp = prep["w"], prep["s"], prep["b"]
    Kp, Np = wp.shape
    M, K = x.shape
    assert K <= Kp

    Mp = _rup(M, 16)
    tm, tk, tn = _select_tiles(Mp, Kp, Np)

    xb = x.astype(jnp.bfloat16)
    if (Mp, Kp) != (M, K):
        xb = jnp.pad(xb, ((0, Mp - M), (0, Kp - K)))

    grid = (Mp // tm, Np // tn, Kp // tk)
    out = pl.pallas_call(
        partial(_mm_bn_act_kernel, act=act),
        out_shape=jax.ShapeDtypeStruct((Mp, Np), jnp.bfloat16),
        grid_spec=pltpu.PrefetchScalarGridSpec(
            num_scalar_prefetch=0,
            grid=grid,
            in_specs=[
                pl.BlockSpec((tm, tk), lambda i, j, k: (i, k)),
                pl.BlockSpec((tk, tn), lambda i, j, k: (k, j)),
                # scale/shift block indices are k-invariant -> not re-DMAed per k step
                pl.BlockSpec((1, tn), lambda i, j, k: (0, j)),
                pl.BlockSpec((1, tn), lambda i, j, k: (0, j)),
            ],
            out_specs=pl.BlockSpec((tm, tn), lambda i, j, k: (i, j)),
            scratch_shapes=[pltpu.VMEM((tm, tn), jnp.float32)],
        ),
        compiler_params=pltpu.CompilerParams(
            dimension_semantics=("parallel", "parallel", "arbitrary"),
            vmem_limit_bytes=_vmem_limit_bytes(tm, tk, tn)),
    )(xb, wp, sp, bp)

    if (M, n_out) != (Mp, Np):
        out = out[:M, :n_out]
    return out


# ---------------------------------------------------------------------------
# im2col + conv wrappers (plain JAX glue, bf16 throughout)
# ---------------------------------------------------------------------------
def _im2col(x, kh, kw, stride, pad):
    # x: (N, H, W, C) bf16 -> cols (N*Ho*Wo, K or Kp) bf16.  When the 128-padding of
    # K is a whole number of channel groups we append zero taps here so no second
    # full-array pad copy is needed downstream.
    x = jnp.pad(x, ((0, 0), (pad, pad), (pad, pad), (0, 0)))
    N, H, W, C = x.shape
    Ho = (H - kh) // stride + 1
    Wo = (W - kw) // stride + 1
    patches = []
    for i in range(kh):
        for j in range(kw):
            patches.append(x[:, i:i + stride * (Ho - 1) + 1:stride,
                             j:j + stride * (Wo - 1) + 1:stride, :])
    K = kh * kw * C
    Kp = _rup(K, 128)
    extra = Kp - K
    if extra > 0 and extra % C == 0:
        zero = jnp.zeros_like(patches[0])
        patches.extend([zero] * (extra // C))
        K = Kp
    cols = jnp.stack(patches, axis=3).reshape(N * Ho * Wo, K)
    return cols, (N, Ho, Wo)
    # TODO(synk): fuse patch extraction into the Pallas kernel (resident padded input
    # + 9/16 shifted tap matmuls) to remove the cols HBM round-trip entirely.


def conv_bn_act(x, prep, cout, k, stride, act):
    cols, (N, Ho, Wo) = _im2col(x, k, k, stride, 1)
    y = fused_matmul(cols, prep, act, cout)
    return y.reshape(N, Ho, Wo, cout)


def conv_transpose_s2_bn_act(x, prep, cout, act):
    # ConvTranspose2d(k=4, stride=2, pad=1) via sub-pixel decomposition:
    # one 3x3 stride-1 pad-1 conv producing 4*cout channels, then depth-to-space.
    N, H, W, _ = x.shape
    cols, _ = _im2col(x, 3, 3, 1, 1)
    y = fused_matmul(cols, prep, act, 4 * cout)            # (N*H*W, 4*cout)
    y = y.reshape(N, H, W, 2, 2, cout)
    return jnp.transpose(y, (0, 1, 3, 2, 4, 5)).reshape(N, 2 * H, 2 * W, cout)


# ---------------------------------------------------------------------------
# Raw parameter init (matching PyTorch layouts / weights_init statistics)
# ---------------------------------------------------------------------------
def _bn_params(c):
    return {"gamma": jnp.ones((c,), jnp.float32), "beta": jnp.zeros((c,), jnp.float32),
            "mean": jnp.zeros((c,), jnp.float32), "var": jnp.ones((c,), jnp.float32)}


def _conv_params(key, cin, cout, k, bn=True):
    n = k * k * cout
    w = jax.random.normal(key, (cout, cin, k, k), jnp.float32) * math.sqrt(2.0 / n)
    p = {"w": w, "b": jnp.zeros((cout,), jnp.float32)}
    if bn:
        p["bn"] = _bn_params(cout)
    return p


def _convT_params(key, cin, cout, k, bn=True):
    fan_in = cin * k * k
    w = jax.random.normal(key, (cin, cout, k, k), jnp.float32) * math.sqrt(1.0 / fan_in)
    p = {"w": w, "b": jnp.zeros((cout,), jnp.float32)}
    if bn:
        p["bn"] = _bn_params(cout)
    return p


def _linear_params(key, fin, fout):
    # weights_init: nn.Linear -> normal_(0, 0.01), bias zero.
    return {"w": jax.random.normal(key, (fout, fin), jnp.float32) * 0.01,
            "b": jnp.zeros((fout,), jnp.float32)}


def init_raw_params(key):
    ks = iter(jax.random.split(key, 40))
    raw = {}
    for name, layers in ENC_ARCH.items():
        raw[name] = [_conv_params(next(ks), cin, cout, k) for (cin, cout, k, s) in layers]
    raw["fc1"] = _linear_params(next(ks), 512 * 8 * 8, 1024)
    raw["fc2"] = _linear_params(next(ks), 1024, 1024)
    raw["fc3"] = _linear_params(next(ks), 1024, 512 * 8 * 8)
    for name, layers in DEC_ARCH.items():
        lst = []
        for i, (cin, cout, k, s) in enumerate(layers):
            bn = not (name == "rconv4" and i == len(layers) - 1)  # last layer: no BN
            lst.append(_convT_params(next(ks), cin, cout, k, bn=bn))
        raw[name] = lst
    return raw


# ---------------------------------------------------------------------------
# One-time weight preparation: fold BN, build (K, N) matrices, pad, cast bf16
# ---------------------------------------------------------------------------
def _fold_bn(p):
    b = p["b"]
    if "bn" in p:
        bn = p["bn"]
        s = bn["gamma"] / jnp.sqrt(bn["var"] + 1e-5)
        return s, b * s + (bn["beta"] - bn["mean"] * s)
    return jnp.ones_like(b), b


def _pad_pack(wmat, scale, shift):
    K, N = wmat.shape
    Kp, Np = _rup(K, 128), _rup(N, 128)
    wp = jnp.zeros((Kp, Np), jnp.bfloat16).at[:K, :N].set(wmat.astype(jnp.bfloat16))
    sp = jnp.zeros((1, Np), jnp.float32).at[0, :N].set(scale.astype(jnp.float32))
    bp = jnp.zeros((1, Np), jnp.float32).at[0, :N].set(shift.astype(jnp.float32))
    return {"w": wp, "s": sp, "b": bp}


def _prep_conv(p):
    w = p["w"]                                     # (Cout, Cin, kh, kw)
    Cout, Cin, kh, kw = w.shape
    wmat = jnp.transpose(w, (2, 3, 1, 0)).reshape(kh * kw * Cin, Cout)
    s, b = _fold_bn(p)
    return _pad_pack(wmat, s, b)


def _prep_convT_s1(p):
    # stride-1 ConvTranspose == direct conv with spatially flipped, channel-swapped kernel
    q = dict(p)
    q["w"] = jnp.transpose(jnp.flip(p["w"], axis=(2, 3)), (1, 0, 2, 3))  # (Cout,Cin,k,k)
    return _prep_conv(q)


def _prep_convT_s2(p):
    # stride-2, k=4, p=1 ConvTranspose -> 3x3 conv with 4*Cout outputs (sub-pixel form).
    # out[n, 2qi+rh, 2qj+rw, co] = sum_{ci,dh,dw} x_pad[n, qi+dh, qj+dw, ci]
    #                               * w[ci, co, 2*(1-dh)+rh+1, 2*(1-dw)+rw+1]
    w = p["w"]                                     # (Cin, Cout, 4, 4)
    Cin, Cout = w.shape[0], w.shape[1]
    W = jnp.zeros((3, 3, Cin, 2, 2, Cout), jnp.float32)
    for dh in range(3):
        for rh in range(2):
            th = 2 * (1 - dh) + rh + 1
            if not 0 <= th < 4:
                continue
            for dw in range(3):
                for rw in range(2):
                    tw = 2 * (1 - dw) + rw + 1
                    if not 0 <= tw < 4:
                        continue
                    W = W.at[dh, dw, :, rh, rw, :].set(w[:, :, th, tw])
    wmat = W.reshape(9 * Cin, 4 * Cout)            # N ordering = (rh, rw, cout)
    s, b = _fold_bn(p)
    return _pad_pack(wmat, jnp.tile(s, 4), jnp.tile(b, 4))


def prepare_params(raw):
    prep = {}
    for name in ENC_ARCH:
        prep[name] = [_prep_conv(p) for p in raw[name]]
    for name in ("fc1", "fc2", "fc3"):
        w, b = raw[name]["w"], raw[name]["b"]
        prep[name] = _pad_pack(w.T, jnp.ones_like(b), b)
    for name, layers in DEC_ARCH.items():
        prep[name] = [
            _prep_convT_s2(p) if s == 2 else _prep_convT_s1(p)
            for p, (cin, cout, k, s) in zip(raw[name], layers)
        ]
    return prep


# ---------------------------------------------------------------------------
# Forward pass (mirrors Generator_Net.forward, eval mode)
# ---------------------------------------------------------------------------
def generator_forward(prep, x_nchw):
    x = jnp.transpose(x_nchw, (0, 2, 3, 1)).astype(jnp.bfloat16)   # NCHW -> NHWC bf16

    for name in ("conv1", "conv2", "conv3", "conv4"):
        for p, (cin, cout, k, s) in zip(prep[name], ENC_ARCH[name]):
            x = conv_bn_act(x, p, cout, k, s, "relu")

    n = x.shape[0]
    # PyTorch view(-1, 512*8*8) flattens NCHW -> match that ordering.
    flat = jnp.transpose(x, (0, 3, 1, 2)).reshape(n, 512 * 8 * 8)
    # TODO(synk): Dropout = identity (eval mode).
    f = fused_matmul(flat, prep["fc1"], "relu", 1024)
    f = fused_matmul(f, prep["fc2"], "relu", 1024)
    f = fused_matmul(f, prep["fc3"], "relu", 512 * 8 * 8)
    x = jnp.transpose(f.reshape(n, 512, 8, 8), (0, 2, 3, 1))       # back to NHWC

    for name in ("rconv1", "rconv2", "rconv3", "rconv4"):
        layers = DEC_ARCH[name]
        for i, (p, (cin, cout, k, s)) in enumerate(zip(prep[name], layers)):
            last = (name == "rconv4" and i == len(layers) - 1)
            act = "tanh" if last else "relu"                        # F.tanh fused in kernel
            if s == 1:
                x = conv_bn_act(x, p, cout, k, 1, act)
            else:
                x = conv_transpose_s2_bn_act(x, p, cout, act)

    return jnp.transpose(x, (0, 3, 1, 2)).astype(jnp.float32)      # NHWC -> NCHW


# ---------------------------------------------------------------------------
# Numerical self-check of the conv / conv-transpose rewrites vs lax reference
# ---------------------------------------------------------------------------
def _self_check(key):
    k1, k2, k3, k4, kx = jax.random.split(key, 5)
    cin, cout, H = 8, 8, 12
    x = jax.random.normal(kx, (1, cin, H, H), jnp.float32) * 0.5
    x_nhwc = jnp.transpose(x, (0, 2, 3, 1)).astype(jnp.bfloat16)

    def conv_ref(x, w, stride, pad):
        return jax.lax.conv_general_dilated(
            x, w, window_strides=(stride, stride), padding=[(pad, pad)] * 2,
            dimension_numbers=("NCHW", "OIHW", "NCHW"))

    def convT_ref(x, w, k, stride, pad):
        # PyTorch ConvTranspose2d (w: (Cin,Cout,k,k)) == lhs-dilated conv with the
        # spatially flipped, channel-swapped kernel and padding k-1-p.
        w_fs = jnp.flip(jnp.transpose(w, (1, 0, 2, 3)), axis=(2, 3))
        return jax.lax.conv_general_dilated(
            x, w_fs, window_strides=(1, 1),
            padding=[(k - 1 - pad, k - 1 - pad)] * 2,
            lhs_dilation=(stride, stride),
            dimension_numbers=("NCHW", "OIHW", "NCHW"))

    def check(mine_nhwc, ref_nchw, name):
        mine = jnp.transpose(mine_nhwc, (0, 3, 1, 2)).astype(jnp.float32)
        err = jnp.max(jnp.abs(mine - ref_nchw)) / (jnp.max(jnp.abs(ref_nchw)) + 1e-6)
        assert float(err) < 5e-2, f"{name}: rel err {float(err):.3e}"

    # Conv2d k=3 s=1 and k=4 s=2 (encoder path).
    for k, s, kk in ((3, 1, k1), (4, 2, k2)):
        p = _conv_params(kk, cin, cout, k, bn=False)
        y = conv_bn_act(x_nhwc, _prep_conv(p), cout, k, s, "linear")
        check(y, conv_ref(x, p["w"], s, 1), f"conv_k{k}_s{s}")

    # ConvTranspose2d k=3 s=1 (flipped-kernel rewrite).
    pT1 = _convT_params(k3, cin, cout, 3, bn=False)
    y = conv_bn_act(x_nhwc, _prep_convT_s1(pT1), cout, 3, 1, "linear")
    check(y, convT_ref(x, pT1["w"], 3, 1, 1), "convT_k3_s1")

    # ConvTranspose2d k=4 s=2 p=1 (sub-pixel rewrite + depth-to-space).
    pT2 = _convT_params(k4, cin, cout, 4, bn=False)
    y = conv_transpose_s2_bn_act(x_nhwc, _prep_convT_s2(pT2), cout, "linear")
    check(y, convT_ref(x, pT2["w"], 4, 2, 1), "convT_k4_s2")


if __name__ == "__main__":
    key = jax.random.PRNGKey(0)
    pkey, xkey, ckey = jax.random.split(key, 3)

    # Validate the conv / conv-transpose lowerings against lax at small shapes.
    _self_check(ckey)

    raw = init_raw_params(pkey)
    prep = prepare_params(raw)   # one-time: BN fold, (K,N) layout, pad, bf16 cast
    # The FC bottleneck (512*8*8) fixes spatial size at 128x128; use batch=1.
    x = jax.random.normal(xkey, (1, 3, 128, 128), jnp.float32)

    fwd = jax.jit(generator_forward)
    out = jax.block_until_ready(fwd(prep, x))
    assert out.shape == (1, 3, 128, 128), out.shape
    assert bool(jnp.all(jnp.isfinite(out)))
    assert bool(jnp.all(jnp.abs(out) <= 1.0 + 1e-6))   # tanh output range
    print("KERNEL_OK")
</pallas_src>

<mosaic_0001>
module attributes {stable_mosaic.version = 11 : i64} {
  func.func @_mm_bn_act_kernel(%arg0: i32, %arg1: i32, %arg2: i32, %arg3: memref<144x128xbf16, #tpu.memory_space<vmem>>, %arg4: memref<128x128xbf16, #tpu.memory_space<vmem>>, %arg5: memref<1x128xf32, #tpu.memory_space<vmem>>, %arg6: memref<1x128xf32, #tpu.memory_space<vmem>>, %arg7: memref<144x128xbf16, #tpu.memory_space<vmem>>, %arg8: memref<144x128xf32, #tpu.memory_space<vmem>>) attributes {dimension_semantics = [#tpu.dimension_semantics<parallel>, #tpu.dimension_semantics<parallel>, #tpu.dimension_semantics<arbitrary>], iteration_bounds = array<i64: 1, 1, 1>, scalar_prefetch = 0 : i64, scratch_operands = 1 : i64, tpu.core_type = #tpu.core_type<tc>, window_params = [{transform_indices = @transform_0, window_bounds = array<i64: 144, 128>}, {transform_indices = @transform_1, window_bounds = array<i64: 128, 128>}, {transform_indices = @transform_2, window_bounds = array<i64: 1, 128>}, {transform_indices = @transform_3, window_bounds = array<i64: 1, 128>}, {transform_indices = @transform_4, window_bounds = array<i64: 144, 128>}]} {
    %c0_i32 = arith.constant 0 : i32
    %0 = arith.cmpi eq, %arg2, %c0_i32 : i32
    %1 = arith.extui %0 : i1 to i32
    %c0_i32_0 = arith.constant 0 : i32
    %2 = arith.cmpi ne, %1, %c0_i32_0 : i32
    scf.if %2 {
      %cst_10 = arith.constant 0.000000e+00 : f32
      %12 = vector.broadcast %cst_10 : f32 to vector<144x128xf32>
      %c0_11 = arith.constant 0 : index
      %c0_12 = arith.constant 0 : index
      %13 = vector.load %arg8[%c0_11, %c0_12] : memref<144x128xf32, #tpu.memory_space<vmem>>, vector<144x128xf32>
      tpu.vector_store %arg8[%c0_11, %c0_12], %12 {strides = array<i32>} : memref<144x128xf32, #tpu.memory_space<vmem>>, vector<144x128xf32>,
    } else {
    }
    %c0 = arith.constant 0 : index
    %c0_1 = arith.constant 0 : index
    %3 = vector.load %arg8[%c0, %c0_1] : memref<144x128xf32, #tpu.memory_space<vmem>>, vector<144x128xf32>
    %c0_2 = arith.constant 0 : index
    %c0_3 = arith.constant 0 : index
    %4 = vector.load %arg3[%c0_2, %c0_3] : memref<144x128xbf16, #tpu.memory_space<vmem>>, vector<144x128xbf16>
    %c0_4 = arith.constant 0 : index
    %c0_5 = arith.constant 0 : index
    %5 = vector.load %arg4[%c0_4, %c0_5] : memref<128x128xbf16, #tpu.memory_space<vmem>>, vector<128x128xbf16>
    %cst = arith.constant dense<0.000000e+00> : vector<144x128xf32>
    %6 = tpu.matmul %4, %5, %cst {dimension_numbers = #tpu.dot_dimension_numbers<[1], [0], [0], [1], [0, 0, 1, 1], [], []>} : vector<144x128xbf16>, vector<128x128xbf16>, vector<144x128xf32> -> vector<144x128xf32>
    %7 = arith.addf %3, %6 : vector<144x128xf32>
    %c0_6 = arith.constant 0 : index
    %c0_7 = arith.constant 0 : index
    %8 = vector.load %arg8[%c0_6, %c0_7] : memref<144x128xf32, #tpu.memory_space<vmem>>, vector<144x128xf32>
    tpu.vector_store %arg8[%c0_6, %c0_7], %7 {strides = array<i32>} : memref<144x128xf32, #tpu.memory_space<vmem>>, vector<144x128xf32>,
    %c0_i32_8 = arith.constant 0 : i32
    %9 = arith.cmpi eq, %arg2, %c0_i32_8 : i32
    %10 = arith.extui %9 : i1 to i32
    %c0_i32_9 = arith.constant 0 : i32
    %11 = arith.cmpi ne, %10, %c0_i32_9 : i32
    scf.if %11 {
      %c0_10 = arith.constant 0 : index
      %c0_11 = arith.constant 0 : index
      %12 = vector.load %arg8[%c0_10, %c0_11] : memref<144x128xf32, #tpu.memory_space<vmem>>, vector<144x128xf32>
      %c0_12 = arith.constant 0 : index
      %c0_13 = arith.constant 0 : index
      %13 = vector.load %arg5[%c0_12, %c0_13] : memref<1x128xf32, #tpu.memory_space<vmem>>, vector<1x128xf32>
      %14 = vector.broadcast %13 : vector<1x128xf32> to vector<144x128xf32>
      %15 = arith.mulf %12, %14 : vector<144x128xf32>
      %c0_14 = arith.constant 0 : index
      %c0_15 = arith.constant 0 : index
      %16 = vector.load %arg6[%c0_14, %c0_15] : memref<1x128xf32, #tpu.memory_space<vmem>>, vector<1x128xf32>
      %17 = vector.broadcast %16 : vector<1x128xf32> to vector<144x128xf32>
      %18 = arith.addf %15, %17 : vector<144x128xf32>
      %19 = arith.truncf %18 : vector<144x128xf32> to vector<144x128xbf16>
      %c0_16 = arith.constant 0 : index
      %c0_17 = arith.constant 0 : index
      %20 = vector.load %arg7[%c0_16, %c0_17] : memref<144x128xbf16, #tpu.memory_space<vmem>>, vector<144x128xbf16>
      tpu.vector_store %arg7[%c0_16, %c0_17], %19 {strides = array<i32>} : memref<144x128xbf16, #tpu.memory_space<vmem>>, vector<144x128xbf16>,
    } else {
    }
    return
  }
  func.func @transform_0(%arg0: i32, %arg1: i32, %arg2: i32) -> (i32, i32) {
    %c0_i32 = arith.constant 0 : i32
    return %arg0, %arg2 : i32, i32
  }
  func.func @transform_1(%arg0: i32, %arg1: i32, %arg2: i32) -> (i32, i32) {
    %c0_i32 = arith.constant 0 : i32
    return %arg2, %arg1 : i32, i32
  }
  func.func @transform_2(%arg0: i32, %arg1: i32, %arg2: i32) -> (i32, i32) {
    %c0_i32 = arith.constant 0 : i32
    %c0_i32_0 = arith.constant 0 : i32
    return %c0_i32, %arg1 : i32, i32
  }
  func.func @transform_3(%arg0: i32, %arg1: i32, %arg2: i32) -> (i32, i32) {
    %c0_i32 = arith.constant 0 : i32
    %c0_i32_0 = arith.constant 0 : i32
    return %c0_i32, %arg1 : i32, i32
  }
  func.func @transform_4(%arg0: i32, %arg1: i32, %arg2: i32) -> (i32, i32) {
    %c0_i32 = arith.constant 0 : i32
    return %arg0, %arg1 : i32, i32
  }
}

</mosaic_0001>

<llo_original>
// kernel: tpu_custom_call.1
$region0: #{tpu_custom_call.1}
  #allocation0 [shape = 'u32[]', space=smem, size = 0x4, offset = 0x4, fixed_abs, tag = 'smem constant byte address 0x4 - core index']
  #allocation1 [shape = 'u32[144,128]{1,0:T(1,128)}', space=vmem, size = 0x12000, scoped, tag = 'internal scratch']
  #allocation2 [shape = 'f32[144,128]{1,0:T(8,128)}', space=vmem, size = 0x12000, scoped, tag = 'scratch operand']
  %s0 = inlined_call_operand.hbm [shape: bf16[144,128], index: 0, kind: input, shape index: {}]
  %s1 = inlined_call_operand.hbm [shape: bf16[128,128], index: 1, kind: input, shape index: {}]
  %s2 = inlined_call_operand.vmem [shape: f32[1,128], index: 2, kind: input, shape index: {}]
  %s3 = inlined_call_operand.vmem [shape: f32[1,128], index: 3, kind: input, shape index: {}]
  %s4 = inlined_call_operand.hbm [shape: bf16[144,128], index: 4, kind: output, shape index: {}]
  %s5 = sld [smem:[#allocation0]]
  $region42: #{tpu_custom_call.1} parent=0
    _
  %s7 = ssub.s32 1, %s5
  %s8 = scalar_select 0, %s7, %s5
  $region1: #{tpu_custom_call.1} parent=0
    #allocation3 [shape = 'u8[36864]{0}', space=vmem, size = 0x9000, scoped, tag = 'input window, operand 0, single buffered']
    #allocation4 [shape = 's32[1]{0}', space=sflag, size = 0x4, scoped, tag = 'scoped memory for tpu_custom_call.1']
    #allocation5 [shape = 's32[1]{0}', space=sflag, size = 0x4, scoped, tag = 'scoped memory for tpu_custom_call.1']
    #allocation6 [shape = 'u8[32768]{0}', space=vmem, size = 0x8000, scoped, tag = 'input window, operand 1, single buffered']
    #allocation7 [shape = 's32[1]{0}', space=sflag, size = 0x4, scoped, tag = 'scoped memory for tpu_custom_call.1']
    #allocation8 [shape = 'u8[36864]{0}', space=vmem, size = 0x9000, scoped, tag = 'output window, operand 0, single buffered']
    %9 = vsyncpa [#allocation4], 0
    %10 = vsyncpa [#allocation7], 0
    %11 = vsyncpa [#allocation5], 0
    // Predicated region
    $region2: #{tpu_custom_call.1} parent=1 // pred_check
      _
    $region3: #{tpu_custom_call.1} parent=1 // pred_check_branch
      %13 = sbr.rel (0) target = $region5
    $region4: #{tpu_custom_call.1} parent=1 // pred_region
      %s15 = ssub.s32 1152, 1152
      %16 = vsyncadd [#allocation4], %s15
      %s17 = sshll.u32 [#allocation3], 4
      %s18 = int_to_ptr.vmem [resolvable:$true] %s17
      %23 = dma.hbm_to_vmem [thread:$0]  %s0, 1152, %s18, [#allocation4], 64, 64, 4
    $region5: #{tpu_custom_call.1} parent=1 // pred_fallthru
      _
    // Predicated region
    $region6: #{tpu_custom_call.1} parent=1 // pred_check
      _
    $region7: #{tpu_custom_call.1} parent=1 // pred_check_branch
      %25 = sbr.rel (0) target = $region9
    $region8: #{tpu_custom_call.1} parent=1 // pred_region
      %s27 = ssub.s32 1024, 1024
      %28 = vsyncadd [#allocation7], %s27
      %s29 = sshll.u32 [#allocation6], 4
      %s30 = int_to_ptr.vmem [resolvable:$true] %s29
      %35 = dma.hbm_to_vmem [thread:$0]  %s1, 1024, %s30, [#allocation7], 64, 64, 4
    $region9: #{tpu_custom_call.1} parent=1 // pred_fallthru
      _
    // Predicated region
    $region10: #{tpu_custom_call.1} parent=1 // pred_check
      _
    $region11: #{tpu_custom_call.1} parent=1 // pred_check_branch
      %37 = sbr.rel (0) target = $region13
    $region12: #{tpu_custom_call.1} parent=1 // pred_region
      _
    $region13: #{tpu_custom_call.1} parent=1 // pred_fallthru
      _
    // Predicated region
    $region14: #{tpu_custom_call.1} parent=1 // pred_check
      _
    $region15: #{tpu_custom_call.1} parent=1 // pred_check_branch
      %39 = sbr.rel (0) target = $region17
    $region16: #{tpu_custom_call.1} parent=1 // pred_region
      _
    $region17: #{tpu_custom_call.1} parent=1 // pred_fallthru
      _
    // Predicated region
    $region18: #{tpu_custom_call.1} parent=1 // pred_check
      _
    $region19: #{tpu_custom_call.1} parent=1 // pred_check_branch
      %41 = sbr.rel (0) target = $region21
    $region20: #{tpu_custom_call.1} parent=1 // pred_region
      %42 = dma.done [#allocation4], 1152
    $region21: #{tpu_custom_call.1} parent=1 // pred_fallthru
      _
    // Predicated region
    $region22: #{tpu_custom_call.1} parent=1 // pred_check
      _
    $region23: #{tpu_custom_call.1} parent=1 // pred_check_branch
      %44 = sbr.rel (0) target = $region25
    $region24: #{tpu_custom_call.1} parent=1 // pred_region
      %45 = dma.done [#allocation7], 1024
    $region25: #{tpu_custom_call.1} parent=1 // pred_fallthru
      _
    %p47 = scmp.eq.s32.totalorder 0, 0
    // Predicated region
    $region26: #{tpu_custom_call.1} parent=1 // pred_check
      %p48 = pneg %p47
    $region27: #{tpu_custom_call.1} parent=1 // pred_check_branch
      %50 = sbr.rel (%p48) target = $region29
    $region28: #{tpu_custom_call.1} parent=1 // pred_region
      %51 = vst [vmem:[#allocation2] sm:$0xff] 0.0
      %52 = vst [vmem:[#allocation2 + $0x8] sm:$0xff] 0.0
      %53 = vst [vmem:[#allocation2 + $0x10] sm:$0xff] 0.0
      %54 = vst [vmem:[#allocation2 + $0x18] sm:$0xff] 0.0
      %55 = vst [vmem:[#allocation2 + $0x20] sm:$0xff] 0.0
      %56 = vst [vmem:[#allocation2 + $0x28] sm:$0xff] 0.0
      %57 = vst [vmem:[#allocation2 + $0x30] sm:$0xff] 0.0
      %58 = vst [vmem:[#allocation2 + $0x38] sm:$0xff] 0.0
      %59 = vst [vmem:[#allocation2 + $0x40] sm:$0xff] 0.0
      %60 = vst [vmem:[#allocation2 + $0x48] sm:$0xff] 0.0
      %61 = vst [vmem:[#allocation2 + $0x50] sm:$0xff] 0.0
      %62 = vst [vmem:[#allocation2 + $0x58] sm:$0xff] 0.0
      %63 = vst [vmem:[#allocation2 + $0x60] sm:$0xff] 0.0
      %64 = vst [vmem:[#allocation2 + $0x68] sm:$0xff] 0.0
      %65 = vst [vmem:[#allocation2 + $0x70] sm:$0xff] 0.0
      %66 = vst [vmem:[#allocation2 + $0x78] sm:$0xff] 0.0
      %67 = vst [vmem:[#allocation2 + $0x80] sm:$0xff] 0.0
      %68 = vst [vmem:[#allocation2 + $0x88] sm:$0xff] 0.0
    $region29: #{tpu_custom_call.1} parent=1 // pred_fallthru
      _
    %v69 = vld [vmem:[#allocation2] sm:$0xff]
    %v70 = vld [vmem:[#allocation2 + $0x8] sm:$0xff]
    %v71 = vld [vmem:[#allocation2 + $0x10] sm:$0xff]
    %v72 = vld [vmem:[#allocation2 + $0x18] sm:$0xff]
    %v73 = vld [vmem:[#allocation2 + $0x20] sm:$0xff]
    %v74 = vld [vmem:[#allocation2 + $0x28] sm:$0xff]
    %v75 = vld [vmem:[#allocation2 + $0x30] sm:$0xff]
    %v76 = vld [vmem:[#allocation2 + $0x38] sm:$0xff]
    %v77 = vld [vmem:[#allocation2 + $0x40] sm:$0xff]
    %v78 = vld [vmem:[#allocation2 + $0x48] sm:$0xff]
    %v79 = vld [vmem:[#allocation2 + $0x50] sm:$0xff]
    %v80 = vld [vmem:[#allocation2 + $0x58] sm:$0xff]
    %v81 = vld [vmem:[#allocation2 + $0x60] sm:$0xff]
    %v82 = vld [vmem:[#allocation2 + $0x68] sm:$0xff]
    %v83 = vld [vmem:[#allocation2 + $0x70] sm:$0xff]
    %v84 = vld [vmem:[#allocation2 + $0x78] sm:$0xff]
    %v85 = vld [vmem:[#allocation2 + $0x80] sm:$0xff]
    %v86 = vld [vmem:[#allocation2 + $0x88] sm:$0xff]
    %v87 = vld [vmem:[#allocation3] sm:$0xf]
    %v88 = vld [vmem:[#allocation3 + $0x4] sm:$0xf]
    %v89 = vld [vmem:[#allocation3 + $0x8] sm:$0xf]
    %v90 = vld [vmem:[#allocation3 + $0xc] sm:$0xf]
    %v91 = vld [vmem:[#allocation3 + $0x10] sm:$0xf]
    %v92 = vld [vmem:[#allocation3 + $0x14] sm:$0xf]
    %v93 = vld [vmem:[#allocation3 + $0x18] sm:$0xf]
    %v94 = vld [vmem:[#allocation3 + $0x1c] sm:$0xf]
    %v95 = vld [vmem:[#allocation3 + $0x20] sm:$0xf]
    %v96 = vld [vmem:[#allocation3 + $0x24] sm:$0xf]
    %v97 = vld [vmem:[#allocation3 + $0x28] sm:$0xf]
    %v98 = vld [vmem:[#allocation3 + $0x2c] sm:$0xf]
    %v99 = vld [vmem:[#allocation3 + $0x30] sm:$0xf]
    %v100 = vld [vmem:[#allocation3 + $0x34] sm:$0xf]
    %v101 = vld [vmem:[#allocation3 + $0x38] sm:$0xf]
    %v102 = vld [vmem:[#allocation3 + $0x3c] sm:$0xf]
    %v103 = vld [vmem:[#allocation3 + $0x40] sm:$0xf]
    %v104 = vld [vmem:[#allocation3 + $0x44] sm:$0xf]
    %v105 = vld [vmem:[#allocation6] sm:$0xf]
    %v106 = vld [vmem:[#allocation6 + $0x4] sm:$0xf]
    %v107 = vld [vmem:[#allocation6 + $0x8] sm:$0xf]
    %v108 = vld [vmem:[#allocation6 + $0xc] sm:$0xf]
    %v109 = vld [vmem:[#allocation6 + $0x10] sm:$0xf]
    %v110 = vld [vmem:[#allocation6 + $0x14] sm:$0xf]
    %v111 = vld [vmem:[#allocation6 + $0x18] sm:$0xf]
    %v112 = vld [vmem:[#allocation6 + $0x1c] sm:$0xf]
    %v113 = vld [vmem:[#allocation6 + $0x20] sm:$0xf]
    %v114 = vld [vmem:[#allocation6 + $0x24] sm:$0xf]
    %v115 = vld [vmem:[#allocation6 + $0x28] sm:$0xf]
    %v116 = vld [vmem:[#allocation6 + $0x2c] sm:$0xf]
    %v117 = vld [vmem:[#allocation6 + $0x30] sm:$0xf]
    %v118 = vld [vmem:[#allocation6 + $0x34] sm:$0xf]
    %v119 = vld [vmem:[#allocation6 + $0x38] sm:$0xf]
    %v120 = vld [vmem:[#allocation6 + $0x3c] sm:$0xf]
    %v139 = vunpack.c.l.b16 %v87
    %v140 = vunpack.c.l.b16 %v88
    %v141 = vunpack.c.l.b16 %v89
    %v142 = vunpack.c.l.b16 %v90
    %v143 = vunpack.c.l.b16 %v91
    %v144 = vunpack.c.l.b16 %v92
    %v145 = vunpack.c.l.b16 %v93
    %v146 = vunpack.c.l.b16 %v94
    %v147 = vunpack.c.l.b16 %v95
    %v148 = vunpack.c.l.b16 %v96
    %v149 = vunpack.c.l.b16 %v97
    %v150 = vunpack.c.l.b16 %v98
    %v151 = vunpack.c.l.b16 %v99
    %v152 = vunpack.c.l.b16 %v100
    %v153 = vunpack.c.l.b16 %v101
    %v154 = vunpack.c.l.b16 %v102
    %v155 = vunpack.c.l.b16 %v103
    %v156 = vunpack.c.l.b16 %v104
    %v157 = vpack.c.b16 %v140, %v139
    %v158 = vpack.c.b16 %v142, %v141
    %v159 = vpack.c.b16 %v144, %v143
    %v160 = vpack.c.b16 %v146, %v145
    %v161 = vpack.c.b16 %v148, %v147
    %v162 = vpack.c.b16 %v150, %v149
    %v163 = vpack.c.b16 %v152, %v151
    %v164 = vpack.c.b16 %v154, %v153
    %v165 = vpack.c.b16 %v156, %v155
    %v191 = vunpack.c.l.b16 %v105
    %v192 = vunpack.c.l.b16 %v106
    %v193 = vunpack.c.l.b16 %v107
    %v194 = vunpack.c.l.b16 %v108
    %v195 = vunpack.c.l.b16 %v109
    %v196 = vunpack.c.l.b16 %v110
    %v197 = vunpack.c.l.b16 %v111
    %v198 = vunpack.c.l.b16 %v112
    %v199 = vunpack.c.l.b16 %v113
    %v200 = vunpack.c.l.b16 %v114
    %v201 = vunpack.c.l.b16 %v115
    %v202 = vunpack.c.l.b16 %v116
    %v203 = vunpack.c.l.b16 %v117
    %v204 = vunpack.c.l.b16 %v118
    %v205 = vunpack.c.l.b16 %v119
    %v206 = vunpack.c.l.b16 %v120
    %v207 = vpack.c.b16 %v192, %v191
    %v208 = vpack.c.b16 %v194, %v193
    %v209 = vpack.c.b16 %v196, %v195
    %v210 = vpack.c.b16 %v198, %v197
    %v211 = vpack.c.b16 %v200, %v199
    %v212 = vpack.c.b16 %v202, %v201
    %v213 = vpack.c.b16 %v204, %v203
    %v214 = vpack.c.b16 %v206, %v205
    %223 = vmatprep.subr.bf16.mxu0 0
    %224 = vmatpush1.bf16.msra.mxu0 %v207
    %225 = vmatprep.subr.bf16.mxu0 0
    %226 = vmatpush1.bf16.msra.mxu0 %v208
    %227 = vmatprep.subr.bf16.mxu0 0
    %228 = vmatpush1.bf16.msra.mxu0 %v209
    %229 = vmatprep.subr.bf16.mxu0 0
    %230 = vmatpush1.bf16.msra.mxu0 %v210
    %231 = vmatprep.subr.bf16.mxu0 0
    %232 = vmatpush1.bf16.msra.mxu0 %v211
    %233 = vmatprep.subr.bf16.mxu0 0
    %234 = vmatpush1.bf16.msra.mxu0 %v212
    %235 = vmatprep.subr.bf16.mxu0 0
    %236 = vmatpush1.bf16.msra.mxu0 %v213
    %237 = vmatprep.subr.bf16.mxu0 0
    %238 = vmatpush1.bf16.msra.mxu0 %v214
    %239 = vmatprep.subr.bf16.mxu0 0
    %240 = vmatpush1.bf16.msra.mxu0 0
    %241 = vmatprep.subr.bf16.mxu0 0
    %242 = vmatpush1.bf16.msra.mxu0 0
    %243 = vmatprep.subr.bf16.mxu0 0
    %244 = vmatpush1.bf16.msra.mxu0 0
    %245 = vmatprep.subr.bf16.mxu0 0
    %246 = vmatpush1.bf16.msra.mxu0 0
    %247 = vmatprep.subr.bf16.mxu0 0
    %248 = vmatpush1.bf16.msra.mxu0 0
    %249 = vmatprep.subr.bf16.mxu0 0
    %250 = vmatpush1.bf16.msra.mxu0 0
    %251 = vmatprep.subr.bf16.mxu0 0
    %252 = vmatpush1.bf16.msra.mxu0 0
    %253 = vmatprep.subr.bf16.mxu0 0
    %254 = vmatpush1.bf16.msra.mxu0 0
    %255 = vmatprep.mubr.bf16.mxu0 0
    %256 = vmatmul.mubr.bf16.gmra.mrb[0].mxu0 %v157
    %v257 = vpop.f32.mrb[0].mxu0
    %v258 = vadd.f32 0.0, %v257
    %v259 = vpop.f32.mrb[0].mxu0
    %v260 = vpop.f32.mrb[0].mxu0
    %v261 = vadd.f32 0.0, %v260
    %v262 = vpop.f32.mrb[0].mxu0
    %263 = vmatprep.mubr.bf16.mxu0 0
    %264 = vmatmul.mubr.bf16.gmra.mrb[0].mxu0 %v158
    %v265 = vpop.f32.mrb[0].mxu0
    %v266 = vadd.f32 0.0, %v265
    %v267 = vpop.f32.mrb[0].mxu0
    %v268 = vpop.f32.mrb[0].mxu0
    %v269 = vadd.f32 0.0, %v268
    %v270 = vpop.f32.mrb[0].mxu0
    %271 = vmatprep.mubr.bf16.mxu0 0
    %272 = vmatmul.mubr.bf16.gmra.mrb[0].mxu0 %v159
    %v273 = vpop.f32.mrb[0].mxu0
    %v274 = vadd.f32 0.0, %v273
    %v275 = vpop.f32.mrb[0].mxu0
    %v276 = vpop.f32.mrb[0].mxu0
    %v277 = vadd.f32 0.0, %v276
    %v278 = vpop.f32.mrb[0].mxu0
    %279 = vmatprep.mubr.bf16.mxu0 0
    %280 = vmatmul.mubr.bf16.gmra.mrb[0].mxu0 %v160
    %v281 = vpop.f32.mrb[0].mxu0
    %v282 = vadd.f32 0.0, %v281
    %v283 = vpop.f32.mrb[0].mxu0
    %v284 = vpop.f32.mrb[0].mxu0
    %v285 = vadd.f32 0.0, %v284
    %v286 = vpop.f32.mrb[0].mxu0
    %287 = vmatprep.mubr.bf16.mxu0 0
    %288 = vmatmul.mubr.bf16.gmra.mrb[0].mxu0 %v161
    %v289 = vpop.f32.mrb[0].mxu0
    %v290 = vadd.f32 0.0, %v289
    %v291 = vpop.f32.mrb[0].mxu0
    %v292 = vpop.f32.mrb[0].mxu0
    %v293 = vadd.f32 0.0, %v292
    %v294 = vpop.f32.mrb[0].mxu0
    %295 = vmatprep.mubr.bf16.mxu0 0
    %296 = vmatmul.mubr.bf16.gmra.mrb[0].mxu0 %v162
    %v297 = vpop.f32.mrb[0].mxu0
    %v298 = vadd.f32 0.0, %v297
    %v299 = vpop.f32.mrb[0].mxu0
    %v300 = vpop.f32.mrb[0].mxu0
    %v301 = vadd.f32 0.0, %v300
    %v302 = vpop.f32.mrb[0].mxu0
    %303 = vmatprep.mubr.bf16.mxu0 0
    %304 = vmatmul.mubr.bf16.gmra.mrb[0].mxu0 %v163
    %v305 = vpop.f32.mrb[0].mxu0
    %v306 = vadd.f32 0.0, %v305
    %v307 = vpop.f32.mrb[0].mxu0
    %v308 = vpop.f32.mrb[0].mxu0
    %v309 = vadd.f32 0.0, %v308
    %v310 = vpop.f32.mrb[0].mxu0
    %311 = vmatprep.mubr.bf16.mxu0 0
    %312 = vmatmul.mubr.bf16.gmra.mrb[0].mxu0 %v164
    %v313 = vpop.f32.mrb[0].mxu0
    %v314 = vadd.f32 0.0, %v313
    %v315 = vpop.f32.mrb[0].mxu0
    %v316 = vpop.f32.mrb[0].mxu0
    %v317 = vadd.f32 0.0, %v316
    %v318 = vpop.f32.mrb[0].mxu0
    %319 = vmatprep.mubr.bf16.mxu0 0
    %320 = vmatmul.mubr.bf16.gmra.mrb[0].mxu0 %v165
    %v321 = vpop.f32.mrb[0].mxu0
    %v322 = vadd.f32 0.0, %v321
    %v323 = vpop.f32.mrb[0].mxu0
    %v324 = vpop.f32.mrb[0].mxu0
    %v325 = vadd.f32 0.0, %v324
    %v326 = vpop.f32.mrb[0].mxu0
    %327 = vdwg.mxu0
    %v328 = vadd.f32 %v69, %v258
    %v329 = vadd.f32 %v70, %v261
    %v330 = vadd.f32 %v71, %v266
    %v331 = vadd.f32 %v72, %v269
    %v332 = vadd.f32 %v73, %v274
    %v333 = vadd.f32 %v74, %v277
    %v334 = vadd.f32 %v75, %v282
    %v335 = vadd.f32 %v76, %v285
    %v336 = vadd.f32 %v77, %v290
    %v337 = vadd.f32 %v78, %v293
    %v338 = vadd.f32 %v79, %v298
    %v339 = vadd.f32 %v80, %v301
    %v340 = vadd.f32 %v81, %v306
    %v341 = vadd.f32 %v82, %v309
    %v342 = vadd.f32 %v83, %v314
    %v343 = vadd.f32 %v84, %v317
    %v344 = vadd.f32 %v85, %v322
    %v345 = vadd.f32 %v86, %v325
    %346 = vst [vmem:[#allocation2] sm:$0xff] %v328
    %347 = vst [vmem:[#allocation2 + $0x8] sm:$0xff] %v329
    %348 = vst [vmem:[#allocation2 + $0x10] sm:$0xff] %v330
    %349 = vst [vmem:[#allocation2 + $0x18] sm:$0xff] %v331
    %350 = vst [vmem:[#allocation2 + $0x20] sm:$0xff] %v332
    %351 = vst [vmem:[#allocation2 + $0x28] sm:$0xff] %v333
    %352 = vst [vmem:[#allocation2 + $0x30] sm:$0xff] %v334
    %353 = vst [vmem:[#allocation2 + $0x38] sm:$0xff] %v335
    %354 = vst [vmem:[#allocation2 + $0x40] sm:$0xff] %v336
    %355 = vst [vmem:[#allocation2 + $0x48] sm:$0xff] %v337
    %356 = vst [vmem:[#allocation2 + $0x50] sm:$0xff] %v338
    %357 = vst [vmem:[#allocation2 + $0x58] sm:$0xff] %v339
    %358 = vst [vmem:[#allocation2 + $0x60] sm:$0xff] %v340
    %359 = vst [vmem:[#allocation2 + $0x68] sm:$0xff] %v341
    %360 = vst [vmem:[#allocation2 + $0x70] sm:$0xff] %v342
    %361 = vst [vmem:[#allocation2 + $0x78] sm:$0xff] %v343
    %362 = vst [vmem:[#allocation2 + $0x80] sm:$0xff] %v344
    %363 = vst [vmem:[#allocation2 + $0x88] sm:$0xff] %v345
    // Predicated region
    $region30: #{tpu_custom_call.1} parent=1 // pred_check
      %p364 = pneg %p47
    $region31: #{tpu_custom_call.1} parent=1 // pred_check_branch
      %366 = sbr.rel (%p364) target = $region33
    $region32: #{tpu_custom_call.1} parent=1 // pred_region
      %v367 = vld [vmem:[#allocation2] sm:$0xff]
      %v368 = vld [vmem:[#allocation2 + $0x8] sm:$0xff]
      %v369 = vld [vmem:[#allocation2 + $0x10] sm:$0xff]
      %v370 = vld [vmem:[#allocation2 + $0x18] sm:$0xff]
      %v371 = vld [vmem:[#allocation2 + $0x20] sm:$0xff]
      %v372 = vld [vmem:[#allocation2 + $0x28] sm:$0xff]
      %v373 = vld [vmem:[#allocation2 + $0x30] sm:$0xff]
      %v374 = vld [vmem:[#allocation2 + $0x38] sm:$0xff]
      %v375 = vld [vmem:[#allocation2 + $0x40] sm:$0xff]
      %v376 = vld [vmem:[#allocation2 + $0x48] sm:$0xff]
      %v377 = vld [vmem:[#allocation2 + $0x50] sm:$0xff]
      %v378 = vld [vmem:[#allocation2 + $0x58] sm:$0xff]
      %v379 = vld [vmem:[#allocation2 + $0x60] sm:$0xff]
      %v380 = vld [vmem:[#allocation2 + $0x68] sm:$0xff]
      %v381 = vld [vmem:[#allocation2 + $0x70] sm:$0xff]
      %v382 = vld [vmem:[#allocation2 + $0x78] sm:$0xff]
      %v383 = vld [vmem:[#allocation2 + $0x80] sm:$0xff]
      %v384 = vld [vmem:[#allocation2 + $0x88] sm:$0xff]
      %v385 = vld [vmem:[%s2] sm:$0x1]
      %v387 = vlaneseq
      %v388 = vshrl.u32 %v387, 7
      %v389 = vsub.s32 0, %v388
      %v390 = vrot.slane %v385, %v389
      %v392 = vmul.f32 %v367, %v390
      %v393 = vmul.f32 %v368, %v390
      %v394 = vmul.f32 %v369, %v390
      %v395 = vmul.f32 %v370, %v390
      %v396 = vmul.f32 %v371, %v390
      %v397 = vmul.f32 %v372, %v390
      %v398 = vmul.f32 %v373, %v390
      %v399 = vmul.f32 %v374, %v390
      %v400 = vmul.f32 %v375, %v390
      %v401 = vmul.f32 %v376, %v390
      %v402 = vmul.f32 %v377, %v390
      %v403 = vmul.f32 %v378, %v390
      %v404 = vmul.f32 %v379, %v390
      %v405 = vmul.f32 %v380, %v390
      %v406 = vmul.f32 %v381, %v390
      %v407 = vmul.f32 %v382, %v390
      %v408 = vmul.f32 %v383, %v390
      %v409 = vmul.f32 %v384, %v390
      %v410 = vld [vmem:[%s3] sm:$0x1]
      %v412 = vlaneseq
      %v413 = vshrl.u32 %v412, 7
      %v414 = vsub.s32 0, %v413
      %v415 = vrot.slane %v410, %v414
      %v417 = vadd.f32 %v392, %v415
      %v418 = vadd.f32 %v393, %v415
      %v419 = vadd.f32 %v394, %v415
      %v420 = vadd.f32 %v395, %v415
      %v421 = vadd.f32 %v396, %v415
      %v422 = vadd.f32 %v397, %v415
      %v423 = vadd.f32 %v398, %v415
      %v424 = vadd.f32 %v399, %v415
      %v425 = vadd.f32 %v400, %v415
      %v426 = vadd.f32 %v401, %v415
      %v427 = vadd.f32 %v402, %v415
      %v428 = vadd.f32 %v403, %v415
      %v429 = vadd.f32 %v404, %v415
      %v430 = vadd.f32 %v405, %v415
      %v431 = vadd.f32 %v406, %v415
      %v432 = vadd.f32 %v407, %v415
      %v433 = vadd.f32 %v408, %v415
      %v434 = vadd.f32 %v409, %v415
      %v435 = vpack.c.bf16 %v418, %v417
      %v436 = vpack.c.bf16 %v420, %v419
      %v437 = vpack.c.bf16 %v422, %v421
      %v438 = vpack.c.bf16 %v424, %v423
      %v439 = vpack.c.bf16 %v426, %v425
      %v440 = vpack.c.bf16 %v428, %v427
      %v441 = vpack.c.bf16 %v430, %v429
      %v442 = vpack.c.bf16 %v432, %v431
      %v443 = vpack.c.bf16 %v434, %v433
      %v453 = vunpack.c.l.b16 %v435
      %v454 = vunpack.c.h.b16 %v435
      %v455 = vunpack.c.l.b16 %v436
      %v456 = vunpack.c.h.b16 %v436
      %v457 = vunpack.c.l.b16 %v437
      %v458 = vunpack.c.h.b16 %v437
      %v459 = vunpack.c.l.b16 %v438
      %v460 = vunpack.c.h.b16 %v438
      %v461 = vunpack.c.l.b16 %v439
      %v462 = vunpack.c.h.b16 %v439
      %v463 = vunpack.c.l.b16 %v440
      %v464 = vunpack.c.h.b16 %v440
      %v465 = vunpack.c.l.b16 %v441
      %v466 = vunpack.c.h.b16 %v441
      %v467 = vunpack.c.l.b16 %v442
      %v468 = vunpack.c.h.b16 %v442
      %v469 = vunpack.c.l.b16 %v443
      %v470 = vunpack.c.h.b16 %v443
      %v471 = vpack.c.b16 %v453, %v453
      %v472 = vpack.c.b16 %v454, %v454
      %v473 = vpack.c.b16 %v455, %v455
      %v474 = vpack.c.b16 %v456, %v456
      %v475 = vpack.c.b16 %v457, %v457
      %v476 = vpack.c.b16 %v458, %v458
      %v477 = vpack.c.b16 %v459, %v459
      %v478 = vpack.c.b16 %v460, %v460
      %v479 = vpack.c.b16 %v461, %v461
      %v480 = vpack.c.b16 %v462, %v462
      %v481 = vpack.c.b16 %v463, %v463
      %v482 = vpack.c.b16 %v464, %v464
      %v483 = vpack.c.b16 %v465, %v465
      %v484 = vpack.c.b16 %v466, %v466
      %v485 = vpack.c.b16 %v467, %v467
      %v486 = vpack.c.b16 %v468, %v468
      %v487 = vpack.c.b16 %v469, %v469
      %v488 = vpack.c.b16 %v470, %v470
      %507 = vst [vmem:[#allocation8] sm:$0xf] %v471
      %508 = vst [vmem:[#allocation8 + $0x4] sm:$0xf] %v472
      %509 = vst [vmem:[#allocation8 + $0x8] sm:$0xf] %v473
      %510 = vst [vmem:[#allocation8 + $0xc] sm:$0xf] %v474
      %511 = vst [vmem:[#allocation8 + $0x10] sm:$0xf] %v475
      %512 = vst [vmem:[#allocation8 + $0x14] sm:$0xf] %v476
      %513 = vst [vmem:[#allocation8 + $0x18] sm:$0xf] %v477
      %514 = vst [vmem:[#allocation8 + $0x1c] sm:$0xf] %v478
      %515 = vst [vmem:[#allocation8 + $0x20] sm:$0xf] %v479
      %516 = vst [vmem:[#allocation8 + $0x24] sm:$0xf] %v480
      %517 = vst [vmem:[#allocation8 + $0x28] sm:$0xf] %v481
      %518 = vst [vmem:[#allocation8 + $0x2c] sm:$0xf] %v482
      %519 = vst [vmem:[#allocation8 + $0x30] sm:$0xf] %v483
      %520 = vst [vmem:[#allocation8 + $0x34] sm:$0xf] %v484
      %521 = vst [vmem:[#allocation8 + $0x38] sm:$0xf] %v485
      %522 = vst [vmem:[#allocation8 + $0x3c] sm:$0xf] %v486
      %523 = vst [vmem:[#allocation8 + $0x40] sm:$0xf] %v487
      %524 = vst [vmem:[#allocation8 + $0x44] sm:$0xf] %v488
    $region33: #{tpu_custom_call.1} parent=1 // pred_fallthru
      _
    // Predicated region
    $region34: #{tpu_custom_call.1} parent=1 // pred_check
      _
    $region35: #{tpu_custom_call.1} parent=1 // pred_check_branch
      %526 = sbr.rel (0) target = $region37
    $region36: #{tpu_custom_call.1} parent=1 // pred_region
      %s528 = ssub.s32 1152, 1152
      %529 = vsyncadd [#allocation5], %s528
      %s530 = sshll.u32 [#allocation8], 4
      %s531 = int_to_ptr.vmem [resolvable:$true] %s530
      %536 = dma.vmem_to_hbm [thread:$0]  %s531, 1152, %s4, [#allocation5], 64, 64, 4
    $region37: #{tpu_custom_call.1} parent=1 // pred_fallthru
      _
    // Predicated region
    $region38: #{tpu_custom_call.1} parent=1 // pred_check
      _
    $region39: #{tpu_custom_call.1} parent=1 // pred_check_branch
      %538 = sbr.rel (0) target = $region41
    $region40: #{tpu_custom_call.1} parent=1 // pred_region
      %539 = dma.done [#allocation5], 1152
    $region41: #{tpu_custom_call.1} parent=1 // pred_fallthru
      _
    %540 = vsyncpa [#allocation4], 1
    %541 = vsyncpa [#allocation7], 1
    %542 = vsyncpa [#allocation5], 1

</llo_original>
